<compile_context>
chip_gen: v5e
topology: v5e:2x2
jax: 0.10.0
libtpu: 0.0.40
codegen_flags: <defaults>
</compile_context>

<pallas_src>
import jax
import jax.numpy as jnp
from jax import lax
from jax.experimental import pallas as pl
from jax.experimental.pallas import tpu as pltpu

EPS = 1e-6


def _sublayer_connection_kernel(x_ref, w_ref, bias_ref, o_ref):
    # x_ref: (TILE_R, F)   w_ref: (F, F) [a_2 pre-folded]   bias_ref: (1, F) f32
    x = x_ref[...].astype(jnp.float32)
    n = x.shape[-1]

    # --- LayerNorm (unbiased variance, eps on variance -> matches the spec) ---
    mean = jnp.mean(x, axis=-1, keepdims=True)
    diff = x - mean
    var_unbiased = jnp.sum(diff * diff, axis=-1, keepdims=True) * (1.0 / (n - 1))
    normed = diff * lax.rsqrt(var_unbiased + EPS)      # rsqrt -> EUP slot

    # --- sublayer: Linear(F, F) on the MXU (weight-dtype operands, f32 acc) ---
    y = jnp.dot(normed.astype(w_ref.dtype), w_ref[...],
                preferred_element_type=jnp.float32)
    y = y + bias_ref[...]

    # --- dropout (eval-mode identity) + residual; re-read x to shorten the
    #     f32 live range across the matmul (less vreg pressure / spills). ---
    o_ref[...] = (x_ref[...].astype(jnp.float32) + y).astype(o_ref.dtype)


def fold_params(a2, b2, w, bias, *, weight_dtype=jnp.bfloat16):
    """One-time parameter prep (NOT per call): fold the LayerNorm affine into
    the Linear:  (z*a2 + b2) @ W + bias == z @ (a2[:,None]*W) + (b2 @ W + bias)."""
    a2f = a2.astype(jnp.float32)
    b2f = b2.astype(jnp.float32)
    wf = w.astype(jnp.float32)
    w_folded = (a2f[:, None] * wf).astype(weight_dtype)
    bias_folded = (b2f @ wf + bias.astype(jnp.float32)).reshape(1, -1)
    return w_folded, bias_folded


def _vmem_budget_bytes():
    """Generation-aware VMEM budget: ~75% of physical capacity
    (v7x: 64 MiB -> ~48 MiB, v5e/v6e: 128 MiB -> ~96 MiB)."""
    cap = None
    try:
        cap = getattr(pltpu.get_tpu_info(), "vmem_capacity_bytes", None)
    except Exception:
        cap = None
    if not cap or cap < (16 << 20):
        cap = 64 << 20  # conservative fallback (v7x-sized)
    return int(cap * 3 // 4)


def _choose_tile_r(rows, feat, x_itemsize, w_bytes, vmem_budget):
    """Row-tile size: full extent for tiny inputs, otherwise 256..1024 rows
    chosen so double-buffered in+out tiles + the single-buffered resident W fit
    the per-generation VMEM budget and the grid has >= 2 steps (megacore)."""
    if rows <= 256:
        return rows                       # block == full array dim is legal
    avail = max(vmem_budget - w_bytes - (2 << 20), 2 << 20)
    max_rows = max(avail // (4 * feat * x_itemsize), 8)   # 2-buf in + 2-buf out
    tile = 1024
    while tile > 256 and (tile > max_rows or pl.cdiv(rows, tile) < 2):
        tile //= 2
    return max(tile, 256)                 # floor per perf guidance


def sublayer_connection(x, w_folded, bias_folded, *, tile_r=None):
    """x: [B, S, F]; w_folded: [F, F]; bias_folded: [1, F] or [F] -> [B, S, F]"""
    B, S, F = x.shape
    rows = B * S
    x2d = x.reshape(rows, F)
    bias2d = bias_folded.reshape(1, F).astype(jnp.float32)

    x_itm = jnp.dtype(x.dtype).itemsize
    w_itm = jnp.dtype(w_folded.dtype).itemsize
    w_bytes = F * F * w_itm

    budget = _vmem_budget_bytes()
    if tile_r is None:
        tile_r = _choose_tile_r(rows, F, x_itm, w_bytes, budget)
    grid = (pl.cdiv(rows, tile_r),)       # ragged last tile is safe (row-independent)

    # Scoped-VMEM limit: double-buffered (in + out) row tiles + resident W/bias
    # + slack, clamped to the per-generation budget (never above physical VMEM).
    vmem_need = 4 * tile_r * F * x_itm + w_bytes + 2 * F * 4 + (2 << 20)
    vmem_limit = int(min(max(vmem_need, 16 << 20), budget))

    cost = pl.CostEstimate(
        flops=2 * rows * F * F + 8 * rows * F,
        transcendentals=rows,                               # one rsqrt per row
        bytes_accessed=2 * rows * F * x_itm + w_bytes + F * 4,
    )

    out2d = pl.pallas_call(
        _sublayer_connection_kernel,
        out_shape=jax.ShapeDtypeStruct((rows, F), x.dtype),
        grid=grid,
        in_specs=[
            # x: streamed row tiles (default double-buffered pipeline).
            pl.BlockSpec((tile_r, F), lambda i: (i, 0)),
            # W' / bias': grid-invariant -> single-buffered resident in VMEM.
            pl.BlockSpec((F, F), lambda i: (0, 0), pipeline_mode=pl.Buffered(1)),
            pl.BlockSpec((1, F), lambda i: (0, 0), pipeline_mode=pl.Buffered(1)),
        ],
        out_specs=pl.BlockSpec((tile_r, F), lambda i: (i, 0)),
        compiler_params=pltpu.CompilerParams(
            dimension_semantics=("parallel",),              # megacore row sharding
            vmem_limit_bytes=vmem_limit,
        ),
        cost_estimate=cost,
    )(x2d, w_folded, bias2d)

    return out2d.reshape(B, S, F)


def _reference(x, a2, b2, w, bias):
    # Pure-JAX reference implementing the PyTorch module formula literally
    # (eval-mode dropout): a_2*(x-mean)/sqrt(std**2+eps)+b_2, then Linear, +x.
    xf = x.astype(jnp.float32)
    mean = jnp.mean(xf, axis=-1, keepdims=True)
    var_unbiased = jnp.sum((xf - mean) ** 2, axis=-1, keepdims=True) / (x.shape[-1] - 1)
    normed = a2 * (xf - mean) / jnp.sqrt(var_unbiased + EPS) + b2
    y = normed @ w.astype(jnp.float32) + bias
    return (xf + y).astype(x.dtype)


if __name__ == "__main__":
    key = jax.random.PRNGKey(0)
    # F = 128 -> lane-dense vregs / unmasked stores; rows = 16 (one small tile).
    B, S, F = 2, 8, 128

    kx, kw, kb = jax.random.split(key, 3)
    x = jax.random.normal(kx, (B, S, F), dtype=jnp.float32)

    # LayerNorm params (as in __init__: ones / zeros).
    a2 = jnp.ones((F,), dtype=jnp.float32)
    b2 = jnp.zeros((F,), dtype=jnp.float32)

    # Deterministic sublayer = Linear(F, F).
    w = jax.random.normal(kw, (F, F), dtype=jnp.float32) * (1.0 / jnp.sqrt(F))
    bias = jax.random.normal(kb, (F,), dtype=jnp.float32) * 0.01

    ref = _reference(x, a2, b2, w, bias)

    # 1) f32-weight path: tight numerics check against the PyTorch formula.
    w_f32, bias_f32 = fold_params(a2, b2, w, bias, weight_dtype=jnp.float32)
    out_f32 = jax.block_until_ready(sublayer_connection(x, w_f32, bias_f32))
    assert jnp.allclose(out_f32, ref, atol=2e-4, rtol=2e-4), "f32 path mismatch"

    # 2) bf16-weight fast path (default): MXU-rate operands, f32 accumulation.
    w_bf16, bias_bf16 = fold_params(a2, b2, w, bias)   # bf16 default
    out = jax.block_until_ready(sublayer_connection(x, w_bf16, bias_bf16))
    assert jnp.allclose(out, ref, atol=5e-2, rtol=5e-2), "bf16 path mismatch"

    print("KERNEL_OK")
</pallas_src>

<mosaic_0001>
module attributes {stable_mosaic.version = 11 : i64} {
  func.func @_sublayer_connection_kernel(%arg0: i32, %arg1: memref<16x128xf32, #tpu.memory_space<vmem>>, %arg2: memref<128x128xf32, #tpu.memory_space<vmem>>, %arg3: memref<1x128xf32, #tpu.memory_space<vmem>>, %arg4: memref<16x128xf32, #tpu.memory_space<vmem>>) attributes {dimension_semantics = [#tpu.dimension_semantics<parallel>], iteration_bounds = array<i64: 1>, scalar_prefetch = 0 : i64, scratch_operands = 0 : i64, tpu.core_type = #tpu.core_type<tc>, window_params = [{transform_indices = @transform_0, window_bounds = array<i64: 16, 128>}, {pipeline_mode = #tpu.pipeline_mode<synchronous>, transform_indices = @transform_1, window_bounds = array<i64: 128, 128>}, {pipeline_mode = #tpu.pipeline_mode<synchronous>, transform_indices = @transform_2, window_bounds = array<i64: 1, 128>}, {transform_indices = @transform_3, window_bounds = array<i64: 16, 128>}]} {
    %c0 = arith.constant 0 : index
    %c0_0 = arith.constant 0 : index
    %0 = vector.load %arg1[%c0, %c0_0] : memref<16x128xf32, #tpu.memory_space<vmem>>, vector<16x128xf32>
    %cst = arith.constant dense<0.000000e+00> : vector<16xf32>
    %1 = vector.multi_reduction <add>, %0, %cst [1] : vector<16x128xf32> to vector<16xf32>
    %2 = vector.shape_cast %1 : vector<16xf32> to vector<16x1xf32>
    %cst_1 = arith.constant 1.280000e+02 : f32
    %3 = vector.broadcast %cst_1 : f32 to vector<16x1xf32>
    %4 = arith.divf %2, %3 : vector<16x1xf32>
    %5 = vector.broadcast %4 : vector<16x1xf32> to vector<16x128xf32>
    %6 = arith.subf %0, %5 : vector<16x128xf32>
    %7 = arith.mulf %6, %6 : vector<16x128xf32>
    %cst_2 = arith.constant dense<0.000000e+00> : vector<16xf32>
    %8 = vector.multi_reduction <add>, %7, %cst_2 [1] : vector<16x128xf32> to vector<16xf32>
    %9 = vector.shape_cast %8 : vector<16xf32> to vector<16x1xf32>
    %cst_3 = arith.constant 0.00787401571 : f32
    %10 = vector.broadcast %cst_3 : f32 to vector<16x1xf32>
    %11 = arith.mulf %9, %10 : vector<16x1xf32>
    %cst_4 = arith.constant 9.99999997E-7 : f32
    %12 = vector.broadcast %cst_4 : f32 to vector<16x1xf32>
    %13 = arith.addf %11, %12 : vector<16x1xf32>
    %14 = math.rsqrt %13 : vector<16x1xf32>
    %15 = vector.broadcast %14 : vector<16x1xf32> to vector<16x128xf32>
    %16 = arith.mulf %6, %15 : vector<16x128xf32>
    %c0_5 = arith.constant 0 : index
    %c0_6 = arith.constant 0 : index
    %17 = vector.load %arg2[%c0_5, %c0_6] : memref<128x128xf32, #tpu.memory_space<vmem>>, vector<128x128xf32>
    %cst_7 = arith.constant dense<0.000000e+00> : vector<16x128xf32>
    %18 = tpu.matmul %16, %17, %cst_7 {dimension_numbers = #tpu.dot_dimension_numbers<[1], [0], [0], [1], [0, 0, 1, 1], [], []>} : vector<16x128xf32>, vector<128x128xf32>, vector<16x128xf32> -> vector<16x128xf32>
    %c0_8 = arith.constant 0 : index
    %c0_9 = arith.constant 0 : index
    %19 = vector.load %arg3[%c0_8, %c0_9] : memref<1x128xf32, #tpu.memory_space<vmem>>, vector<1x128xf32>
    %20 = vector.broadcast %19 : vector<1x128xf32> to vector<16x128xf32>
    %21 = arith.addf %18, %20 : vector<16x128xf32>
    %c0_10 = arith.constant 0 : index
    %c0_11 = arith.constant 0 : index
    %22 = vector.load %arg1[%c0_10, %c0_11] : memref<16x128xf32, #tpu.memory_space<vmem>>, vector<16x128xf32>
    %23 = arith.addf %22, %21 : vector<16x128xf32>
    %c0_12 = arith.constant 0 : index
    %c0_13 = arith.constant 0 : index
    %24 = vector.load %arg4[%c0_12, %c0_13] : memref<16x128xf32, #tpu.memory_space<vmem>>, vector<16x128xf32>
    tpu.vector_store %arg4[%c0_12, %c0_13], %23 {strides = array<i32>} : memref<16x128xf32, #tpu.memory_space<vmem>>, vector<16x128xf32>,
    return
  }
  func.func @transform_0(%arg0: i32) -> (i32, i32) {
    %c0_i32 = arith.constant 0 : i32
    %c0_i32_0 = arith.constant 0 : i32
    return %arg0, %c0_i32 : i32, i32
  }
  func.func @transform_1(%arg0: i32) -> (i32, i32) {
    %c0_i32 = arith.constant 0 : i32
    %c0_i32_0 = arith.constant 0 : i32
    %c0_i32_1 = arith.constant 0 : i32
    return %c0_i32, %c0_i32_0 : i32, i32
  }
  func.func @transform_2(%arg0: i32) -> (i32, i32) {
    %c0_i32 = arith.constant 0 : i32
    %c0_i32_0 = arith.constant 0 : i32
    %c0_i32_1 = arith.constant 0 : i32
    return %c0_i32, %c0_i32_0 : i32, i32
  }
  func.func @transform_3(%arg0: i32) -> (i32, i32) {
    %c0_i32 = arith.constant 0 : i32
    %c0_i32_0 = arith.constant 0 : i32
    return %arg0, %c0_i32 : i32, i32
  }
}

</mosaic_0001>

<llo_original>
// kernel: tpu_custom_call.1
$region0: #{tpu_custom_call.1}
  #allocation0 [shape = 'u32[]', space=smem, size = 0x4, offset = 0x4, fixed_abs, tag = 'smem constant byte address 0x4 - core index']
  #allocation1 [shape = 'u32[72,128]{1,0:T(1,128)}', space=vmem, size = 0x9000, scoped, tag = 'internal scratch']
  %s0 = inlined_call_operand.hbm [shape: f32[16,128], index: 0, kind: input, shape index: {}]
  %s1 = inlined_call_operand.hbm [shape: f32[128,128], index: 1, kind: input, shape index: {}]
  %s2 = inlined_call_operand.vmem [shape: f32[1,128], index: 2, kind: input, shape index: {}]
  %s3 = inlined_call_operand.hbm [shape: f32[16,128], index: 3, kind: output, shape index: {}]
  %s4 = sld [smem:[#allocation0]]
  $region30: #{tpu_custom_call.1} parent=0
    _
  %s6 = ssub.s32 1, %s4
  %s7 = scalar_select 0, %s6, %s4
  $region1: #{tpu_custom_call.1} parent=0
    #allocation2 [shape = 'u8[8192]{0}', space=vmem, size = 0x2000, scoped, tag = 'input window, operand 0, single buffered']
    #allocation3 [shape = 's32[1]{0}', space=sflag, size = 0x4, scoped, tag = 'scoped memory for tpu_custom_call.1']
    #allocation4 [shape = 's32[1]{0}', space=sflag, size = 0x4, scoped, tag = 'scoped memory for tpu_custom_call.1']
    #allocation5 [shape = 'u8[65536]{0}', space=vmem, size = 0x10000, scoped, tag = 'input window, operand 1, single buffered']
    #allocation6 [shape = 's32[1]{0}', space=sflag, size = 0x4, scoped, tag = 'scoped memory for tpu_custom_call.1']
    #allocation7 [shape = 'u8[8192]{0}', space=vmem, size = 0x2000, scoped, tag = 'output window, operand 0, single buffered']
    %8 = vsyncpa [#allocation3], 0
    %9 = vsyncpa [#allocation6], 0
    %10 = vsyncpa [#allocation4], 0
    // Predicated region
    $region2: #{tpu_custom_call.1} parent=1 // pred_check
      _
    $region3: #{tpu_custom_call.1} parent=1 // pred_check_branch
      %12 = sbr.rel (0) target = $region5
    $region4: #{tpu_custom_call.1} parent=1 // pred_region
      %14 = vsyncadd [#allocation3], 0
      %s15 = sshll.u32 %s0, 4
      %s16 = int_to_ptr.hbm [resolvable:$true] %s15
      %s17 = sshll.u32 [#allocation2], 4
      %s18 = int_to_ptr.vmem [resolvable:$true] %s17
      %23 = dma.hbm_to_vmem [thread:$0]  %s16, 256, %s18, [#allocation3], 128, 128, 8
    $region5: #{tpu_custom_call.1} parent=1 // pred_fallthru
      _
    // Predicated region
    $region6: #{tpu_custom_call.1} parent=1 // pred_check
      _
    $region7: #{tpu_custom_call.1} parent=1 // pred_check_branch
      %25 = sbr.rel (0) target = $region9
    $region8: #{tpu_custom_call.1} parent=1 // pred_region
      %27 = vsyncadd [#allocation6], 0
      %s28 = sshll.u32 %s1, 4
      %s29 = int_to_ptr.hbm [resolvable:$true] %s28
      %s30 = sshll.u32 [#allocation5], 4
      %s31 = int_to_ptr.vmem [resolvable:$true] %s30
      %36 = dma.hbm_to_vmem [thread:$0]  %s29, 2048, %s31, [#allocation6], 128, 128, 8
    $region9: #{tpu_custom_call.1} parent=1 // pred_fallthru
      _
    // Predicated region
    $region10: #{tpu_custom_call.1} parent=1 // pred_check
      _
    $region11: #{tpu_custom_call.1} parent=1 // pred_check_branch
      %38 = sbr.rel (0) target = $region13
    $region12: #{tpu_custom_call.1} parent=1 // pred_region
      _
    $region13: #{tpu_custom_call.1} parent=1 // pred_fallthru
      _
    // Predicated region
    $region14: #{tpu_custom_call.1} parent=1 // pred_check
      _
    $region15: #{tpu_custom_call.1} parent=1 // pred_check_branch
      %40 = sbr.rel (0) target = $region17
    $region16: #{tpu_custom_call.1} parent=1 // pred_region
      %42 = dma.done [#allocation3], 256
    $region17: #{tpu_custom_call.1} parent=1 // pred_fallthru
      _
    // Predicated region
    $region18: #{tpu_custom_call.1} parent=1 // pred_check
      _
    $region19: #{tpu_custom_call.1} parent=1 // pred_check_branch
      %44 = sbr.rel (0) target = $region21
    $region20: #{tpu_custom_call.1} parent=1 // pred_region
      %46 = dma.done [#allocation6], 2048
    $region21: #{tpu_custom_call.1} parent=1 // pred_fallthru
      _
    %v47 = vld [vmem:[#allocation2] sm:$0xff]
    %v48 = vld [vmem:[#allocation2 + $0x8] sm:$0xff]
    %49 = vadd.xlane.f32.xlu0 %v47
    %v50 = vpop.xlane.xlu0 %49
    %51 = vadd.xlane.f32.xlu0 %v48
    %v52 = vpop.xlane.xlu0 %51
    %v53 = vrcp.pop 128.0
    %v54 = vmul.f32 128.0, %v53
    %v55 = vsub.f32 1.0, %v54
    %v56 = vmul.f32 %v53, %v55
    %v57 = vadd.f32 %v53, %v56
    %vm58 = vweird.f32 %v53
    %v59 = vsel %vm58, %v53, %v57
    %v60 = vmul.f32 %v50, %v59
    %v61 = vmul.f32 %v52, %v59
    %v62 = vsub.f32 %v47, %v60
    %v63 = vsub.f32 %v48, %v61
    %v64 = vmul.f32 %v62, %v62
    %v65 = vmul.f32 %v63, %v63
    %66 = vadd.xlane.f32.xlu0 %v64
    %v67 = vpop.xlane.xlu0 %66
    %68 = vadd.xlane.f32.xlu0 %v65
    %v69 = vpop.xlane.xlu0 %68
    %v70 = vmul.f32 %v67, 0.007874016
    %v71 = vmul.f32 %v69, 0.007874016
    %v72 = vadd.f32 %v70, 1e-06
    %v73 = vadd.f32 %v71, 1e-06
    %v74 = vrsqrt.pop %v72
    %v75 = vmul.f32 %v74, %v72
    %v76 = vmul.f32 %v75, %v74
    %v77 = vmul.f32 0.5, %v76
    %v78 = vsub.f32 1.5, %v77
    %v79 = vmul.f32 %v74, %v78
    %vm80 = vweird.f32 %v72
    %vm81 = vweird.f32 %v74
    %vm82 = vmor %vm80, %vm81
    %v83 = vsel %vm82, %v74, %v79
    %v84 = vrsqrt.pop %v73
    %v85 = vmul.f32 %v84, %v73
    %v86 = vmul.f32 %v85, %v84
    %v87 = vmul.f32 0.5, %v86
    %v88 = vsub.f32 1.5, %v87
    %v89 = vmul.f32 %v84, %v88
    %vm90 = vweird.f32 %v73
    %vm91 = vweird.f32 %v84
    %vm92 = vmor %vm90, %vm91
    %v93 = vsel %vm92, %v84, %v89
    %v94 = vmul.f32 %v62, %v83
    %v95 = vmul.f32 %v63, %v93
    %v96 = vld [vmem:[#allocation5] sm:$0xff]
    %v97 = vld [vmem:[#allocation5 + $0x8] sm:$0xff]
    %v98 = vld [vmem:[#allocation5 + $0x10] sm:$0xff]
    %v99 = vld [vmem:[#allocation5 + $0x18] sm:$0xff]
    %v100 = vld [vmem:[#allocation5 + $0x20] sm:$0xff]
    %v101 = vld [vmem:[#allocation5 + $0x28] sm:$0xff]
    %v102 = vld [vmem:[#allocation5 + $0x30] sm:$0xff]
    %v103 = vld [vmem:[#allocation5 + $0x38] sm:$0xff]
    %v104 = vld [vmem:[#allocation5 + $0x40] sm:$0xff]
    %v105 = vld [vmem:[#allocation5 + $0x48] sm:$0xff]
    %v106 = vld [vmem:[#allocation5 + $0x50] sm:$0xff]
    %v107 = vld [vmem:[#allocation5 + $0x58] sm:$0xff]
    %v108 = vld [vmem:[#allocation5 + $0x60] sm:$0xff]
    %v109 = vld [vmem:[#allocation5 + $0x68] sm:$0xff]
    %v110 = vld [vmem:[#allocation5 + $0x70] sm:$0xff]
    %v111 = vld [vmem:[#allocation5 + $0x78] sm:$0xff]
    %v112 = vld [vmem:[%s2] sm:$0x1]
    %v114 = vperm.slane %v112, 0
    %116 = vmatpush.msra.mxu0 %v111
    %117 = vmatpush.msra.mxu0 %v110
    %118 = vmatpush.msra.mxu0 %v109
    %119 = vmatpush.msra.mxu0 %v108
    %120 = vmatpush.msra.mxu0 %v107
    %121 = vmatpush.msra.mxu0 %v106
    %122 = vmatpush.msra.mxu0 %v105
    %123 = vmatpush.msra.mxu0 %v104
    %124 = vmatpush.msra.mxu0 %v103
    %125 = vmatpush.msra.mxu0 %v102
    %126 = vmatpush.msra.mxu0 %v101
    %127 = vmatpush.msra.mxu0 %v100
    %128 = vmatpush.msra.mxu0 %v99
    %129 = vmatpush.msra.mxu0 %v98
    %130 = vmatpush.msra.mxu0 %v97
    %131 = vmatpush.msra.mxu0 %v96
    %132 = vmatmul.f32.gmra.mxu0 %v94
    %v133 = vpop.f32.mrf.mxu0
    %v134 = vadd.f32 %v114, %v133
    %135 = vmatmul.f32.gmra.mxu0 %v95
    %v136 = vpop.f32.mrf.mxu0
    %v137 = vadd.f32 %v114, %v136
    %138 = vdwg.mxu0
    %v139 = vadd.f32 %v47, %v134
    %v140 = vadd.f32 %v48, %v137
    %141 = vst [vmem:[#allocation7] sm:$0xff] %v139
    %142 = vst [vmem:[#allocation7 + $0x8] sm:$0xff] %v140
    // Predicated region
    $region22: #{tpu_custom_call.1} parent=1 // pred_check
      _
    $region23: #{tpu_custom_call.1} parent=1 // pred_check_branch
      %144 = sbr.rel (0) target = $region25
    $region24: #{tpu_custom_call.1} parent=1 // pred_region
      %146 = vsyncadd [#allocation4], 0
      %s147 = sshll.u32 [#allocation7], 4
      %s148 = int_to_ptr.vmem [resolvable:$true] %s147
      %s149 = sshll.u32 %s3, 4
      %s150 = int_to_ptr.hbm [resolvable:$true] %s149
      %155 = dma.vmem_to_hbm [thread:$0]  %s148, 256, %s150, [#allocation4], 128, 128, 8
    $region25: #{tpu_custom_call.1} parent=1 // pred_fallthru
      _
    // Predicated region
    $region26: #{tpu_custom_call.1} parent=1 // pred_check
      _
    $region27: #{tpu_custom_call.1} parent=1 // pred_check_branch
      %157 = sbr.rel (0) target = $region29
    $region28: #{tpu_custom_call.1} parent=1 // pred_region
      %159 = dma.done [#allocation4], 256
    $region29: #{tpu_custom_call.1} parent=1 // pred_fallthru
      _
    %160 = vsyncpa [#allocation3], 1
    %161 = vsyncpa [#allocation6], 1
    %162 = vsyncpa [#allocation4], 1

</llo_original>
